<compile_context>
chip_gen: v5e
topology: v5e:2x2
jax: 0.10.0
libtpu: 0.0.40
codegen_flags: <defaults>
</compile_context>

<pallas_src>
import functools

import jax
import jax.numpy as jnp
from jax.experimental import pallas as pl
from jax.experimental.pallas import tpu as pltpu


def _round_up(a, m):
    return (a + m - 1) // m * m


def _softplus(x):
    # PyTorch Softplus (beta=1, threshold=20): x for x > 20, else log(1 + exp(x)).
    safe = jnp.minimum(x, 20.0)
    return jnp.where(x > 20.0, x, jnp.log1p(jnp.exp(safe)))


def _make_kernel(num_parts):
    """Kernel over one batch tile.

    Ref order:
      parts[0..num_parts-1]          [TB, d_p]       input slabs (y_t, [y_0_hat], [x])
      t_ref                          [TB, 1] int32   per-row timestep
      w1_parts[0..num_parts-1]       [d_p, H1]       row-split of W1 (VMEM-resident)
      b1, e1, w2, b2, e2, wf, bf     resident weights / embedding tables
      o_ref                          [TB, y_dim]     output block (full-array last dim)
    """
    def kernel(*refs):
        parts = refs[:num_parts]
        t_ref = refs[num_parts]
        w1_refs = refs[num_parts + 1: 2 * num_parts + 1]
        (b1_ref, e1_ref, w2_ref, b2_ref, e2_ref,
         wf_ref, bf_ref, o_ref) = refs[2 * num_parts + 1:]

        tb = t_ref.shape[0]
        n_steps = e1_ref.shape[0]

        # --- in-kernel gamma lookup: one-hot(t) @ table (rides in MXU slack) ---
        iota = jax.lax.broadcasted_iota(jnp.int32, (tb, n_steps), 1)
        onehot = (iota == t_ref[...]).astype(jnp.float32)            # [TB, n_steps]
        g1 = jnp.dot(onehot, e1_ref[...], preferred_element_type=jnp.float32)
        g2 = jnp.dot(onehot, e2_ref[...], preferred_element_type=jnp.float32)

        # --- ConditionalLinear 1 (+ gamma gate, softplus) ---
        acc = jnp.dot(parts[0][...].astype(jnp.float32), w1_refs[0][...],
                      preferred_element_type=jnp.float32)
        for p in range(1, num_parts):
            acc = acc + jnp.dot(parts[p][...].astype(jnp.float32), w1_refs[p][...],
                                preferred_element_type=jnp.float32)
        h = _softplus(g1 * (acc + b1_ref[...]))

        # --- ConditionalLinear 2 (+ gamma gate, softplus) ---
        h = jnp.dot(h, w2_ref[...], preferred_element_type=jnp.float32) + b2_ref[...]
        h = _softplus(g2 * h)

        # --- final Linear ---
        out = jnp.dot(h, wf_ref[...], preferred_element_type=jnp.float32) + bf_ref[...]
        o_ref[...] = out.astype(o_ref.dtype)

    return kernel


def conditional_classifier_forward(params, x, y_t, y_0_hat, t, *,
                                   cat_x=True, cat_y_pred=True, block_batch=512):
    # ----- input slabs in the PyTorch concat order (no XLA-side concat) -----
    parts = [y_t]
    if cat_y_pred:
        parts.append(y_0_hat)
    if cat_x:
        parts.append(x)
    part_dims = [p.shape[1] for p in parts]
    num_parts = len(parts)

    B = y_t.shape[0]
    H1 = params["w1"].shape[1]
    H2 = params["w2"].shape[1]
    y_dim = params["wf"].shape[1]
    data_dim = sum(part_dims)
    n_steps = params["e1"].shape[0]

    t2 = t.astype(jnp.int32).reshape(B, 1)

    # ----- batch tile: multiple of 8 sublanes; no jnp.pad (ragged tail OK) -----
    TB = max(8, _round_up(min(int(block_batch), B), 8))
    # v7x: make sure there are >= 2 tiles when B is big enough, so the second
    # TensorCore gets work under dimension_semantics=("parallel",).
    if B > 8 and pl.cdiv(B, TB) < 2:
        TB = max(8, _round_up(pl.cdiv(B, 2), 8))
    num_tiles = pl.cdiv(B, TB)

    # ----- weight-side prep (tiny, one-time): split W1 rows by concat layout -----
    w1_parts, off = [], 0
    for d in part_dims:
        w1_parts.append(params["w1"][off:off + d, :])
        off += d

    # ----- specs: activations tiled by batch, weights/tables VMEM-resident -----
    batch_spec = lambda d: pl.BlockSpec((TB, d), lambda b: (b, 0))
    resident = lambda shp: pl.BlockSpec(shp, lambda b: (0, 0))

    in_specs = [batch_spec(d) for d in part_dims]            # y_t / y_0_hat / x
    in_specs += [batch_spec(1)]                               # t  [TB, 1] int32
    in_specs += [resident((d, H1)) for d in part_dims]        # W1 row slabs
    in_specs += [resident((1, H1)), resident((n_steps, H1)),  # b1, e1
                 resident((H1, H2)), resident((1, H2)),       # W2, b2
                 resident((n_steps, H2)),                     # e2
                 resident((H2, y_dim)), resident((1, y_dim))]  # Wf, bf
    out_spec = pl.BlockSpec((TB, y_dim), lambda b: (b, 0))

    operands = (*parts, t2, *w1_parts,
                params["b1"], params["e1"], params["w2"], params["b2"],
                params["e2"], params["wf"], params["bf"])

    flops = 2 * B * (n_steps * (H1 + H2) + data_dim * H1 + H1 * H2 + H2 * y_dim)
    transcendentals = 2 * B * (H1 + H2)                       # exp + log1p per elem
    bytes_accessed = 4 * (B * (data_dim + 1 + y_dim)
                          + data_dim * H1 + H1 + n_steps * H1
                          + H1 * H2 + H2 + n_steps * H2
                          + H2 * y_dim + y_dim)

    return pl.pallas_call(
        _make_kernel(num_parts),
        out_shape=jax.ShapeDtypeStruct((B, y_dim), jnp.float32),
        grid=(num_tiles,),
        in_specs=in_specs,
        out_specs=out_spec,
        compiler_params=pltpu.CompilerParams(
            dimension_semantics=("parallel",)),
        cost_estimate=pl.CostEstimate(
            flops=int(flops),
            transcendentals=int(transcendentals),
            bytes_accessed=int(bytes_accessed)),
    )(*operands)


def init_params(key, data_dim, n_hidden, y_dim, n_steps):
    """Deterministic init mirroring PyTorch defaults:
       Linear: U(-1/sqrt(fan_in), 1/sqrt(fan_in)) for weight and bias.
       Embedding: .uniform_() -> U(0, 1)."""
    sizes = [data_dim] + list(n_hidden)
    keys = jax.random.split(key, 16)
    ki = iter(keys)

    def lin(kw, kb, fan_in, fan_out):
        bound = 1.0 / jnp.sqrt(fan_in)
        w = jax.random.uniform(kw, (fan_in, fan_out), jnp.float32, -bound, bound)
        b = jax.random.uniform(kb, (1, fan_out), jnp.float32, -bound, bound)
        return w, b

    p = {}
    w1, b1 = lin(next(ki), next(ki), sizes[0], sizes[1])
    e1 = jax.random.uniform(next(ki), (n_steps, sizes[1]), jnp.float32, 0.0, 1.0)
    w2, b2 = lin(next(ki), next(ki), sizes[1], sizes[2])
    e2 = jax.random.uniform(next(ki), (n_steps, sizes[2]), jnp.float32, 0.0, 1.0)
    wf, bf = lin(next(ki), next(ki), sizes[2], y_dim)
    p.update(w1=w1, b1=b1, e1=e1, w2=w2, b2=b2, e2=e2, wf=wf, bf=bf)
    return p


def reference_forward(params, x, y_t, y_0_hat, t, *, cat_x=True, cat_y_pred=True):
    parts = [y_t]
    if cat_y_pred:
        parts.append(y_0_hat)
    if cat_x:
        parts.append(x)
    eps = jnp.concatenate(parts, axis=1) if len(parts) > 1 else y_t
    h = eps @ params["w1"] + params["b1"]
    h = jax.nn.softplus(params["e1"][t] * h)
    h = h @ params["w2"] + params["b2"]
    h = jax.nn.softplus(params["e2"][t] * h)
    return h @ params["wf"] + params["bf"]


if __name__ == "__main__":
    # Small shapes consistent with the module; B=24 with the default block_batch
    # exercises the >=2-tile split (TB=16, 2 tiles) and a ragged final block.
    B, x_dim, y_dim = 24, 16, 4
    n_hidden = [32, 32]
    n_steps = 10
    cat_x, cat_y_pred = True, True
    data_dim = y_dim + (x_dim if cat_x else 0) + (y_dim if cat_y_pred else 0)  # 24

    key = jax.random.PRNGKey(0)
    k_p, k_x, k_yt, k_y0, k_t = jax.random.split(key, 5)
    params = init_params(k_p, data_dim, n_hidden, y_dim, n_steps)

    x = jax.random.normal(k_x, (B, x_dim), jnp.float32)
    y_t = jax.random.normal(k_yt, (B, y_dim), jnp.float32)
    y_0_hat = jax.random.normal(k_y0, (B, y_dim), jnp.float32)
    t = jax.random.randint(k_t, (B,), 0, n_steps, jnp.int32)

    fwd = jax.jit(functools.partial(conditional_classifier_forward,
                                    cat_x=cat_x, cat_y_pred=cat_y_pred))
    out = fwd(params, x, y_t, y_0_hat, t)
    out = jax.block_until_ready(out)

    ref = reference_forward(params, x, y_t, y_0_hat, t,
                            cat_x=cat_x, cat_y_pred=cat_y_pred)
    assert out.shape == (B, y_dim)
    assert jnp.allclose(out, ref, atol=1e-5, rtol=1e-5), "mismatch vs JAX reference"
    print("KERNEL_OK")
</pallas_src>

<mosaic_0001>
module attributes {stable_mosaic.version = 11 : i64} {
  func.func @kernel(%arg0: i32, %arg1: memref<16x4xf32, #tpu.memory_space<vmem>>, %arg2: memref<16x4xf32, #tpu.memory_space<vmem>>, %arg3: memref<16x16xf32, #tpu.memory_space<vmem>>, %arg4: memref<16x1xi32, #tpu.memory_space<vmem>>, %arg5: memref<4x32xf32, #tpu.memory_space<vmem>>, %arg6: memref<4x32xf32, #tpu.memory_space<vmem>>, %arg7: memref<16x32xf32, #tpu.memory_space<vmem>>, %arg8: memref<1x32xf32, #tpu.memory_space<vmem>>, %arg9: memref<10x32xf32, #tpu.memory_space<vmem>>, %arg10: memref<32x32xf32, #tpu.memory_space<vmem>>, %arg11: memref<1x32xf32, #tpu.memory_space<vmem>>, %arg12: memref<10x32xf32, #tpu.memory_space<vmem>>, %arg13: memref<32x4xf32, #tpu.memory_space<vmem>>, %arg14: memref<1x4xf32, #tpu.memory_space<vmem>>, %arg15: memref<16x4xf32, #tpu.memory_space<vmem>>) attributes {dimension_semantics = [#tpu.dimension_semantics<parallel>], iteration_bounds = array<i64: 2>, scalar_prefetch = 0 : i64, scratch_operands = 0 : i64, tpu.core_type = #tpu.core_type<tc>, window_params = [{transform_indices = @transform_0, window_bounds = array<i64: 16, 4>}, {transform_indices = @transform_1, window_bounds = array<i64: 16, 4>}, {transform_indices = @transform_2, window_bounds = array<i64: 16, 16>}, {transform_indices = @transform_3, window_bounds = array<i64: 16, 1>}, {pipeline_mode = #tpu.pipeline_mode<synchronous>, transform_indices = @transform_4, window_bounds = array<i64: 4, 32>}, {pipeline_mode = #tpu.pipeline_mode<synchronous>, transform_indices = @transform_5, window_bounds = array<i64: 4, 32>}, {pipeline_mode = #tpu.pipeline_mode<synchronous>, transform_indices = @transform_6, window_bounds = array<i64: 16, 32>}, {pipeline_mode = #tpu.pipeline_mode<synchronous>, transform_indices = @transform_7, window_bounds = array<i64: 1, 32>}, {pipeline_mode = #tpu.pipeline_mode<synchronous>, transform_indices = @transform_8, window_bounds = array<i64: 10, 32>}, {pipeline_mode = #tpu.pipeline_mode<synchronous>, transform_indices = @transform_9, window_bounds = array<i64: 32, 32>}, {pipeline_mode = #tpu.pipeline_mode<synchronous>, transform_indices = @transform_10, window_bounds = array<i64: 1, 32>}, {pipeline_mode = #tpu.pipeline_mode<synchronous>, transform_indices = @transform_11, window_bounds = array<i64: 10, 32>}, {pipeline_mode = #tpu.pipeline_mode<synchronous>, transform_indices = @transform_12, window_bounds = array<i64: 32, 4>}, {pipeline_mode = #tpu.pipeline_mode<synchronous>, transform_indices = @transform_13, window_bounds = array<i64: 1, 4>}, {transform_indices = @transform_14, window_bounds = array<i64: 16, 4>}]} {
    %0 = tpu.iota {dimensions = array<i32: 1>} : vector<16x10xi32>
    %c0 = arith.constant 0 : index
    %c0_0 = arith.constant 0 : index
    %1 = vector.load %arg4[%c0, %c0_0] : memref<16x1xi32, #tpu.memory_space<vmem>>, vector<16x1xi32>
    %2 = vector.broadcast %1 : vector<16x1xi32> to vector<16x10xi32>
    %3 = arith.cmpi eq, %0, %2 : vector<16x10xi32>
    %4 = arith.extui %3 : vector<16x10xi1> to vector<16x10xi32>
    %5 = arith.sitofp %4 : vector<16x10xi32> to vector<16x10xf32>
    %c0_1 = arith.constant 0 : index
    %c0_2 = arith.constant 0 : index
    %6 = vector.load %arg9[%c0_1, %c0_2] : memref<10x32xf32, #tpu.memory_space<vmem>>, vector<10x32xf32>
    %cst = arith.constant dense<0.000000e+00> : vector<16x32xf32>
    %7 = tpu.matmul %5, %6, %cst {dimension_numbers = #tpu.dot_dimension_numbers<[1], [0], [0], [1], [0, 0, 1, 1], [], []>} : vector<16x10xf32>, vector<10x32xf32>, vector<16x32xf32> -> vector<16x32xf32>
    %c0_3 = arith.constant 0 : index
    %c0_4 = arith.constant 0 : index
    %8 = vector.load %arg12[%c0_3, %c0_4] : memref<10x32xf32, #tpu.memory_space<vmem>>, vector<10x32xf32>
    %cst_5 = arith.constant dense<0.000000e+00> : vector<16x32xf32>
    %9 = tpu.matmul %5, %8, %cst_5 {dimension_numbers = #tpu.dot_dimension_numbers<[1], [0], [0], [1], [0, 0, 1, 1], [], []>} : vector<16x10xf32>, vector<10x32xf32>, vector<16x32xf32> -> vector<16x32xf32>
    %c0_6 = arith.constant 0 : index
    %c0_7 = arith.constant 0 : index
    %10 = vector.load %arg1[%c0_6, %c0_7] : memref<16x4xf32, #tpu.memory_space<vmem>>, vector<16x4xf32>
    %c0_8 = arith.constant 0 : index
    %c0_9 = arith.constant 0 : index
    %11 = vector.load %arg5[%c0_8, %c0_9] : memref<4x32xf32, #tpu.memory_space<vmem>>, vector<4x32xf32>
    %cst_10 = arith.constant dense<0.000000e+00> : vector<16x32xf32>
    %12 = tpu.matmul %10, %11, %cst_10 {dimension_numbers = #tpu.dot_dimension_numbers<[1], [0], [0], [1], [0, 0, 1, 1], [], []>} : vector<16x4xf32>, vector<4x32xf32>, vector<16x32xf32> -> vector<16x32xf32>
    %c0_11 = arith.constant 0 : index
    %c0_12 = arith.constant 0 : index
    %13 = vector.load %arg2[%c0_11, %c0_12] : memref<16x4xf32, #tpu.memory_space<vmem>>, vector<16x4xf32>
    %c0_13 = arith.constant 0 : index
    %c0_14 = arith.constant 0 : index
    %14 = vector.load %arg6[%c0_13, %c0_14] : memref<4x32xf32, #tpu.memory_space<vmem>>, vector<4x32xf32>
    %cst_15 = arith.constant dense<0.000000e+00> : vector<16x32xf32>
    %15 = tpu.matmul %13, %14, %cst_15 {dimension_numbers = #tpu.dot_dimension_numbers<[1], [0], [0], [1], [0, 0, 1, 1], [], []>} : vector<16x4xf32>, vector<4x32xf32>, vector<16x32xf32> -> vector<16x32xf32>
    %16 = arith.addf %12, %15 : vector<16x32xf32>
    %c0_16 = arith.constant 0 : index
    %c0_17 = arith.constant 0 : index
    %17 = vector.load %arg3[%c0_16, %c0_17] : memref<16x16xf32, #tpu.memory_space<vmem>>, vector<16x16xf32>
    %c0_18 = arith.constant 0 : index
    %c0_19 = arith.constant 0 : index
    %18 = vector.load %arg7[%c0_18, %c0_19] : memref<16x32xf32, #tpu.memory_space<vmem>>, vector<16x32xf32>
    %cst_20 = arith.constant dense<0.000000e+00> : vector<16x32xf32>
    %19 = tpu.matmul %17, %18, %cst_20 {dimension_numbers = #tpu.dot_dimension_numbers<[1], [0], [0], [1], [0, 0, 1, 1], [], []>} : vector<16x16xf32>, vector<16x32xf32>, vector<16x32xf32> -> vector<16x32xf32>
    %20 = arith.addf %16, %19 : vector<16x32xf32>
    %c0_21 = arith.constant 0 : index
    %c0_22 = arith.constant 0 : index
    %21 = vector.load %arg8[%c0_21, %c0_22] : memref<1x32xf32, #tpu.memory_space<vmem>>, vector<1x32xf32>
    %22 = vector.broadcast %21 : vector<1x32xf32> to vector<16x32xf32>
    %23 = arith.addf %20, %22 : vector<16x32xf32>
    %24 = arith.mulf %7, %23 : vector<16x32xf32>
    %cst_23 = arith.constant 2.000000e+01 : f32
    %25 = vector.broadcast %cst_23 : f32 to vector<16x32xf32>
    %26 = arith.minimumf %24, %25 : vector<16x32xf32>
    %cst_24 = arith.constant 2.000000e+01 : f32
    %27 = vector.broadcast %cst_24 : f32 to vector<16x32xf32>
    %28 = arith.cmpf ogt, %24, %27 : vector<16x32xf32>
    %29 = math.exp %26 : vector<16x32xf32>
    %30 = math.log1p %29 : vector<16x32xf32>
    %31 = arith.select %28, %24, %30 : vector<16x32xi1>, vector<16x32xf32>
    %c0_25 = arith.constant 0 : index
    %c0_26 = arith.constant 0 : index
    %32 = vector.load %arg10[%c0_25, %c0_26] : memref<32x32xf32, #tpu.memory_space<vmem>>, vector<32x32xf32>
    %cst_27 = arith.constant dense<0.000000e+00> : vector<16x32xf32>
    %33 = tpu.matmul %31, %32, %cst_27 {dimension_numbers = #tpu.dot_dimension_numbers<[1], [0], [0], [1], [0, 0, 1, 1], [], []>} : vector<16x32xf32>, vector<32x32xf32>, vector<16x32xf32> -> vector<16x32xf32>
    %c0_28 = arith.constant 0 : index
    %c0_29 = arith.constant 0 : index
    %34 = vector.load %arg11[%c0_28, %c0_29] : memref<1x32xf32, #tpu.memory_space<vmem>>, vector<1x32xf32>
    %35 = vector.broadcast %34 : vector<1x32xf32> to vector<16x32xf32>
    %36 = arith.addf %33, %35 : vector<16x32xf32>
    %37 = arith.mulf %9, %36 : vector<16x32xf32>
    %cst_30 = arith.constant 2.000000e+01 : f32
    %38 = vector.broadcast %cst_30 : f32 to vector<16x32xf32>
    %39 = arith.minimumf %37, %38 : vector<16x32xf32>
    %cst_31 = arith.constant 2.000000e+01 : f32
    %40 = vector.broadcast %cst_31 : f32 to vector<16x32xf32>
    %41 = arith.cmpf ogt, %37, %40 : vector<16x32xf32>
    %42 = math.exp %39 : vector<16x32xf32>
    %43 = math.log1p %42 : vector<16x32xf32>
    %44 = arith.select %41, %37, %43 : vector<16x32xi1>, vector<16x32xf32>
    %c0_32 = arith.constant 0 : index
    %c0_33 = arith.constant 0 : index
    %45 = vector.load %arg13[%c0_32, %c0_33] : memref<32x4xf32, #tpu.memory_space<vmem>>, vector<32x4xf32>
    %cst_34 = arith.constant dense<0.000000e+00> : vector<16x4xf32>
    %46 = tpu.matmul %44, %45, %cst_34 {dimension_numbers = #tpu.dot_dimension_numbers<[1], [0], [0], [1], [0, 0, 1, 1], [], []>} : vector<16x32xf32>, vector<32x4xf32>, vector<16x4xf32> -> vector<16x4xf32>
    %c0_35 = arith.constant 0 : index
    %c0_36 = arith.constant 0 : index
    %47 = vector.load %arg14[%c0_35, %c0_36] : memref<1x4xf32, #tpu.memory_space<vmem>>, vector<1x4xf32>
    %48 = vector.broadcast %47 : vector<1x4xf32> to vector<16x4xf32>
    %49 = arith.addf %46, %48 : vector<16x4xf32>
    %c0_37 = arith.constant 0 : index
    %c0_38 = arith.constant 0 : index
    %50 = vector.load %arg15[%c0_37, %c0_38] : memref<16x4xf32, #tpu.memory_space<vmem>>, vector<16x4xf32>
    tpu.vector_store %arg15[%c0_37, %c0_38], %49 {strides = array<i32>} : memref<16x4xf32, #tpu.memory_space<vmem>>, vector<16x4xf32>,
    return
  }
  func.func @transform_0(%arg0: i32) -> (i32, i32) {
    %c0_i32 = arith.constant 0 : i32
    %c0_i32_0 = arith.constant 0 : i32
    return %arg0, %c0_i32 : i32, i32
  }
  func.func @transform_1(%arg0: i32) -> (i32, i32) {
    %c0_i32 = arith.constant 0 : i32
    %c0_i32_0 = arith.constant 0 : i32
    return %arg0, %c0_i32 : i32, i32
  }
  func.func @transform_2(%arg0: i32) -> (i32, i32) {
    %c0_i32 = arith.constant 0 : i32
    %c0_i32_0 = arith.constant 0 : i32
    return %arg0, %c0_i32 : i32, i32
  }
  func.func @transform_3(%arg0: i32) -> (i32, i32) {
    %c0_i32 = arith.constant 0 : i32
    %c0_i32_0 = arith.constant 0 : i32
    return %arg0, %c0_i32 : i32, i32
  }
  func.func @transform_4(%arg0: i32) -> (i32, i32) {
    %c0_i32 = arith.constant 0 : i32
    %c0_i32_0 = arith.constant 0 : i32
    %c0_i32_1 = arith.constant 0 : i32
    return %c0_i32, %c0_i32_0 : i32, i32
  }
  func.func @transform_5(%arg0: i32) -> (i32, i32) {
    %c0_i32 = arith.constant 0 : i32
    %c0_i32_0 = arith.constant 0 : i32
    %c0_i32_1 = arith.constant 0 : i32
    return %c0_i32, %c0_i32_0 : i32, i32
  }
  func.func @transform_6(%arg0: i32) -> (i32, i32) {
    %c0_i32 = arith.constant 0 : i32
    %c0_i32_0 = arith.constant 0 : i32
    %c0_i32_1 = arith.constant 0 : i32
    return %c0_i32, %c0_i32_0 : i32, i32
  }
  func.func @transform_7(%arg0: i32) -> (i32, i32) {
    %c0_i32 = arith.constant 0 : i32
    %c0_i32_0 = arith.constant 0 : i32
    %c0_i32_1 = arith.constant 0 : i32
    return %c0_i32, %c0_i32_0 : i32, i32
  }
  func.func @transform_8(%arg0: i32) -> (i32, i32) {
    %c0_i32 = arith.constant 0 : i32
    %c0_i32_0 = arith.constant 0 : i32
    %c0_i32_1 = arith.constant 0 : i32
    return %c0_i32, %c0_i32_0 : i32, i32
  }
  func.func @transform_9(%arg0: i32) -> (i32, i32) {
    %c0_i32 = arith.constant 0 : i32
    %c0_i32_0 = arith.constant 0 : i32
    %c0_i32_1 = arith.constant 0 : i32
    return %c0_i32, %c0_i32_0 : i32, i32
  }
  func.func @transform_10(%arg0: i32) -> (i32, i32) {
    %c0_i32 = arith.constant 0 : i32
    %c0_i32_0 = arith.constant 0 : i32
    %c0_i32_1 = arith.constant 0 : i32
    return %c0_i32, %c0_i32_0 : i32, i32
  }
  func.func @transform_11(%arg0: i32) -> (i32, i32) {
    %c0_i32 = arith.constant 0 : i32
    %c0_i32_0 = arith.constant 0 : i32
    %c0_i32_1 = arith.constant 0 : i32
    return %c0_i32, %c0_i32_0 : i32, i32
  }
  func.func @transform_12(%arg0: i32) -> (i32, i32) {
    %c0_i32 = arith.constant 0 : i32
    %c0_i32_0 = arith.constant 0 : i32
    %c0_i32_1 = arith.constant 0 : i32
    return %c0_i32, %c0_i32_0 : i32, i32
  }
  func.func @transform_13(%arg0: i32) -> (i32, i32) {
    %c0_i32 = arith.constant 0 : i32
    %c0_i32_0 = arith.constant 0 : i32
    %c0_i32_1 = arith.constant 0 : i32
    return %c0_i32, %c0_i32_0 : i32, i32
  }
  func.func @transform_14(%arg0: i32) -> (i32, i32) {
    %c0_i32 = arith.constant 0 : i32
    %c0_i32_0 = arith.constant 0 : i32
    return %arg0, %c0_i32 : i32, i32
  }
}

</mosaic_0001>

<llo_original>
// kernel: conditional_classifier_forward.1
$region0: #{conditional_classifier_forward.1}
  #allocation0 [shape = 'u32[]', space=smem, size = 0x4, offset = 0x4, fixed_abs, tag = 'smem constant byte address 0x4 - core index']
  #allocation1 [shape = 'u32[72,128]{1,0:T(1,128)}', space=vmem, size = 0x9000, scoped, tag = 'internal scratch']
  %s0 = inlined_call_operand.vmem [shape: f32[24,4], index: 0, kind: input, shape index: {}]
  %s1 = inlined_call_operand.vmem [shape: f32[24,4], index: 1, kind: input, shape index: {}]
  %s2 = inlined_call_operand.vmem [shape: f32[24,16], index: 2, kind: input, shape index: {}]
  %s3 = inlined_call_operand.vmem [shape: s32[24,1], index: 3, kind: input, shape index: {}]
  %s4 = inlined_call_operand.vmem [shape: f32[4,32], index: 4, kind: input, shape index: {}]
  %s5 = inlined_call_operand.vmem [shape: f32[4,32], index: 5, kind: input, shape index: {}]
  %s6 = inlined_call_operand.vmem [shape: f32[16,32], index: 6, kind: input, shape index: {}]
  %s7 = inlined_call_operand.vmem [shape: f32[1,32], index: 7, kind: input, shape index: {}]
  %s8 = inlined_call_operand.vmem [shape: f32[10,32], index: 8, kind: input, shape index: {}]
  %s9 = inlined_call_operand.vmem [shape: f32[32,32], index: 9, kind: input, shape index: {}]
  %s10 = inlined_call_operand.vmem [shape: f32[1,32], index: 10, kind: input, shape index: {}]
  %s11 = inlined_call_operand.vmem [shape: f32[10,32], index: 11, kind: input, shape index: {}]
  %s12 = inlined_call_operand.vmem [shape: f32[32,4], index: 12, kind: input, shape index: {}]
  %s13 = inlined_call_operand.vmem [shape: f32[1,4], index: 13, kind: input, shape index: {}]
  %s14 = inlined_call_operand.vmem [shape: f32[24,4], index: 14, kind: output, shape index: {}]
  %s15 = sld [smem:[#allocation0]]
  $region137: #{conditional_classifier_forward.1} parent=0
    _
  %s17 = ssub.s32 1, %s15
  %s18 = scalar_select 0, %s17, %s15
  $region1: #{conditional_classifier_forward.1} parent=0
    #allocation2 [shape = 'u8[16384]{0}', space=vmem, size = 0x4000, scoped, tag = 'output window, operand 0']
    loop: start=0, step=1, limit=4
    $region2: #{conditional_classifier_forward.1} parent=1 // loop_pre_header
      _
    $region3: #{conditional_classifier_forward.1} parent=1 // loop_header
      %s20 = sphi 0, %s24
      %p21 = scmp.ge.s32.totalorder %s20, 4
      %s30 = sphi 0, %s32
      %s33 = sphi 0, %s30
      %s34 = sphi 0, %s33
      %s50 = sphi 0, %s34
      %s56 = sphi 0, %s58
      %s59 = sphi 0, %s56
      %s60 = sphi 0, %s59
      %s76 = sphi 0, %s60
      %s82 = sphi 0, %s84
      %s85 = sphi 0, %s82
      %s86 = sphi 0, %s85
      %s102 = sphi 0, %s86
      %s108 = sphi 0, %s110
      %s111 = sphi 0, %s108
      %s112 = sphi 0, %s111
      %s128 = sphi 0, %s112
      %s132 = sphi 0, %s132
      %s134 = sphi 0, %s132
      %s135 = sphi 0, %s134
      %s149 = sphi 0, %s135
      %s153 = sphi 0, %s153
      %s155 = sphi 0, %s153
      %s156 = sphi 0, %s155
      %s170 = sphi 0, %s156
      %s174 = sphi 0, %s174
      %s176 = sphi 0, %s174
      %s177 = sphi 0, %s176
      %s191 = sphi 0, %s177
      %s195 = sphi 0, %s195
      %s197 = sphi 0, %s195
      %s198 = sphi 0, %s197
      %s212 = sphi 0, %s198
      %s216 = sphi 0, %s216
      %s218 = sphi 0, %s216
      %s219 = sphi 0, %s218
      %s233 = sphi 0, %s219
      %s237 = sphi 0, %s237
      %s239 = sphi 0, %s237
      %s240 = sphi 0, %s239
      %s254 = sphi 0, %s240
      %s258 = sphi 0, %s258
      %s260 = sphi 0, %s258
      %s261 = sphi 0, %s260
      %s275 = sphi 0, %s261
      %s279 = sphi 0, %s279
      %s281 = sphi 0, %s279
      %s282 = sphi 0, %s281
      %s296 = sphi 0, %s282
      %s300 = sphi 0, %s300
      %s302 = sphi 0, %s300
      %s303 = sphi 0, %s302
      %s317 = sphi 0, %s303
      %s321 = sphi 0, %s321
      %s323 = sphi 0, %s321
      %s324 = sphi 0, %s323
      %s338 = sphi 0, %s324
      %s344 = sphi 0, %s346
      %s347 = sphi 0, %s344
      %s348 = sphi 0, %s347
      %s364 = sphi 0, %s348
    $region4: #{conditional_classifier_forward.1} parent=1 // loop_header_branch
      %23 = sbr.rel (%p21) target = $region8
    $region5: #{conditional_classifier_forward.1} parent=1 // loop_body
      %s25 = ssub.s32 %s20, 1
      %s26 = ssub.s32 %s20, 2
      %s27 = sadd.s32 %s20, 1
      %s28 = ssub.s32 %s20, %s27
      %p29 = scmp.eq.s32.totalorder %s28, 0
      %s31 = sadd.s32 %s30, 1
      %s32 = scalar_select %p29, %s30, %s31
      %p35 = pneg %p29
      %p36 = scmp.eq.s32.totalorder %s20, 1
      %p37 = por %p35, %p36
      %p38 = scmp.ne.s32.totalorder %s30, %s33
      %p39 = scmp.eq.s32.totalorder %s20, 0
      %p40 = por %p38, %p39
      %p41 = scmp.ne.s32.totalorder %s30, %s33
      %p42 = scmp.eq.s32.totalorder %s25, 1
      %p43 = por %p41, %p42
      %p44 = scmp.ne.s32.totalorder %s33, %s34
      %p45 = scmp.eq.s32.totalorder %s25, 0
      %p46 = por %p44, %p45
      %p47 = scmp.ne.s32.totalorder %s33, %s34
      %p48 = scmp.eq.s32.totalorder %s26, 1
      %p49 = por %p47, %p48
      %p51 = scmp.ne.s32.totalorder %s34, %s50
      %p52 = scmp.eq.s32.totalorder %s26, 0
      %p53 = por %p51, %p52
      %s54 = ssub.s32 %s20, %s27
      %p55 = scmp.eq.s32.totalorder %s54, 0
      %s57 = sadd.s32 %s56, 1
      %s58 = scalar_select %p55, %s56, %s57
      %p61 = pneg %p55
      %p62 = scmp.eq.s32.totalorder %s20, 1
      %p63 = por %p61, %p62
      %p64 = scmp.ne.s32.totalorder %s56, %s59
      %p65 = scmp.eq.s32.totalorder %s20, 0
      %p66 = por %p64, %p65
      %p67 = scmp.ne.s32.totalorder %s56, %s59
      %p68 = scmp.eq.s32.totalorder %s25, 1
      %p69 = por %p67, %p68
      %p70 = scmp.ne.s32.totalorder %s59, %s60
      %p71 = scmp.eq.s32.totalorder %s25, 0
      %p72 = por %p70, %p71
      %p73 = scmp.ne.s32.totalorder %s59, %s60
      %p74 = scmp.eq.s32.totalorder %s26, 1
      %p75 = por %p73, %p74
      %p77 = scmp.ne.s32.totalorder %s60, %s76
      %p78 = scmp.eq.s32.totalorder %s26, 0
      %p79 = por %p77, %p78
      %s80 = ssub.s32 %s20, %s27
      %p81 = scmp.eq.s32.totalorder %s80, 0
      %s83 = sadd.s32 %s82, 1
      %s84 = scalar_select %p81, %s82, %s83
      %p87 = pneg %p81
      %p88 = scmp.eq.s32.totalorder %s20, 1
      %p89 = por %p87, %p88
      %p90 = scmp.ne.s32.totalorder %s82, %s85
      %p91 = scmp.eq.s32.totalorder %s20, 0
      %p92 = por %p90, %p91
      %p93 = scmp.ne.s32.totalorder %s82, %s85
      %p94 = scmp.eq.s32.totalorder %s25, 1
      %p95 = por %p93, %p94
      %p96 = scmp.ne.s32.totalorder %s85, %s86
      %p97 = scmp.eq.s32.totalorder %s25, 0
      %p98 = por %p96, %p97
      %p99 = scmp.ne.s32.totalorder %s85, %s86
      %p100 = scmp.eq.s32.totalorder %s26, 1
      %p101 = por %p99, %p100
      %p103 = scmp.ne.s32.totalorder %s86, %s102
      %p104 = scmp.eq.s32.totalorder %s26, 0
      %p105 = por %p103, %p104
      %s106 = ssub.s32 %s20, %s27
      %p107 = scmp.eq.s32.totalorder %s106, 0
      %s109 = sadd.s32 %s108, 1
      %s110 = scalar_select %p107, %s108, %s109
      %p113 = pneg %p107
      %p114 = scmp.eq.s32.totalorder %s20, 1
      %p115 = por %p113, %p114
      %p116 = scmp.ne.s32.totalorder %s108, %s111
      %p117 = scmp.eq.s32.totalorder %s20, 0
      %p118 = por %p116, %p117
      %p119 = scmp.ne.s32.totalorder %s108, %s111
      %p120 = scmp.eq.s32.totalorder %s25, 1
      %p121 = por %p119, %p120
      %p122 = scmp.ne.s32.totalorder %s111, %s112
      %p123 = scmp.eq.s32.totalorder %s25, 0
      %p124 = por %p122, %p123
      %p125 = scmp.ne.s32.totalorder %s111, %s112
      %p126 = scmp.eq.s32.totalorder %s26, 1
      %p127 = por %p125, %p126
      %p129 = scmp.ne.s32.totalorder %s112, %s128
      %p130 = scmp.eq.s32.totalorder %s26, 0
      %p131 = por %p129, %p130
      %s133 = sadd.s32 %s132, 1
      %p136 = scmp.eq.s32.totalorder %s20, 1
      %p137 = scmp.ne.s32.totalorder %s132, %s134
      %p138 = scmp.eq.s32.totalorder %s20, 0
      %p139 = por %p137, %p138
      %p140 = scmp.ne.s32.totalorder %s132, %s134
      %p141 = scmp.eq.s32.totalorder %s25, 1
      %p142 = por %p140, %p141
      %p143 = scmp.ne.s32.totalorder %s134, %s135
      %p144 = scmp.eq.s32.totalorder %s25, 0
      %p145 = por %p143, %p144
      %p146 = scmp.ne.s32.totalorder %s134, %s135
      %p147 = scmp.eq.s32.totalorder %s26, 1
      %p148 = por %p146, %p147
      %p150 = scmp.ne.s32.totalorder %s135, %s149
      %p151 = scmp.eq.s32.totalorder %s26, 0
      %p152 = por %p150, %p151
      %s154 = sadd.s32 %s153, 1
      %p157 = scmp.eq.s32.totalorder %s20, 1
      %p158 = scmp.ne.s32.totalorder %s153, %s155
      %p159 = scmp.eq.s32.totalorder %s20, 0
      %p160 = por %p158, %p159
      %p161 = scmp.ne.s32.totalorder %s153, %s155
      %p162 = scmp.eq.s32.totalorder %s25, 1
      %p163 = por %p161, %p162
      %p164 = scmp.ne.s32.totalorder %s155, %s156
      %p165 = scmp.eq.s32.totalorder %s25, 0
      %p166 = por %p164, %p165
      %p167 = scmp.ne.s32.totalorder %s155, %s156
      %p168 = scmp.eq.s32.totalorder %s26, 1
      %p169 = por %p167, %p168
      %p171 = scmp.ne.s32.totalorder %s156, %s170
      %p172 = scmp.eq.s32.totalorder %s26, 0
      %p173 = por %p171, %p172
      %s175 = sadd.s32 %s174, 1
      %p178 = scmp.eq.s32.totalorder %s20, 1
      %p179 = scmp.ne.s32.totalorder %s174, %s176
      %p180 = scmp.eq.s32.totalorder %s20, 0
      %p181 = por %p179, %p180
      %p182 = scmp.ne.s32.totalorder %s174, %s176
      %p183 = scmp.eq.s32.totalorder %s25, 1
      %p184 = por %p182, %p183
      %p185 = scmp.ne.s32.totalorder %s176, %s177
      %p186 = scmp.eq.s32.totalorder %s25, 0
      %p187 = por %p185, %p186
      %p188 = scmp.ne.s32.totalorder %s176, %s177
      %p189 = scmp.eq.s32.totalorder %s26, 1
      %p190 = por %p188, %p189
      %p192 = scmp.ne.s32.totalorder %s177, %s191
      %p193 = scmp.eq.s32.totalorder %s26, 0
      %p194 = por %p192, %p193
      %s196 = sadd.s32 %s195, 1
      %p199 = scmp.eq.s32.totalorder %s20, 1
      %p200 = scmp.ne.s32.totalorder %s195, %s197
      %p201 = scmp.eq.s32.totalorder %s20, 0
      %p202 = por %p200, %p201
      %p203 = scmp.ne.s32.totalorder %s195, %s197
      %p204 = scmp.eq.s32.totalorder %s25, 1
      %p205 = por %p203, %p204
      %p206 = scmp.ne.s32.totalorder %s197, %s198
      %p207 = scmp.eq.s32.totalorder %s25, 0
      %p208 = por %p206, %p207
      %p209 = scmp.ne.s32.totalorder %s197, %s198
      %p210 = scmp.eq.s32.totalorder %s26, 1
      %p211 = por %p209, %p210
      %p213 = scmp.ne.s32.totalorder %s198, %s212
      %p214 = scmp.eq.s32.totalorder %s26, 0
      %p215 = por %p213, %p214
      %s217 = sadd.s32 %s216, 1
      %p220 = scmp.eq.s32.totalorder %s20, 1
      %p221 = scmp.ne.s32.totalorder %s216, %s218
      %p222 = scmp.eq.s32.totalorder %s20, 0
      %p223 = por %p221, %p222
      %p224 = scmp.ne.s32.totalorder %s216, %s218
      %p225 = scmp.eq.s32.totalorder %s25, 1
      %p226 = por %p224, %p225
      %p227 = scmp.ne.s32.totalorder %s218, %s219
      %p228 = scmp.eq.s32.totalorder %s25, 0
      %p229 = por %p227, %p228
      %p230 = scmp.ne.s32.totalorder %s218, %s219
      %p231 = scmp.eq.s32.totalorder %s26, 1
      %p232 = por %p230, %p231
      %p234 = scmp.ne.s32.totalorder %s219, %s233
      %p235 = scmp.eq.s32.totalorder %s26, 0
      %p236 = por %p234, %p235
      %s238 = sadd.s32 %s237, 1
      %p241 = scmp.eq.s32.totalorder %s20, 1
      %p242 = scmp.ne.s32.totalorder %s237, %s239
      %p243 = scmp.eq.s32.totalorder %s20, 0
      %p244 = por %p242, %p243
      %p245 = scmp.ne.s32.totalorder %s237, %s239
      %p246 = scmp.eq.s32.totalorder %s25, 1
      %p247 = por %p245, %p246
      %p248 = scmp.ne.s32.totalorder %s239, %s240
      %p249 = scmp.eq.s32.totalorder %s25, 0
      %p250 = por %p248, %p249
      %p251 = scmp.ne.s32.totalorder %s239, %s240
      %p252 = scmp.eq.s32.totalorder %s26, 1
      %p253 = por %p251, %p252
      %p255 = scmp.ne.s32.totalorder %s240, %s254
      %p256 = scmp.eq.s32.totalorder %s26, 0
      %p257 = por %p255, %p256
      %s259 = sadd.s32 %s258, 1
      %p262 = scmp.eq.s32.totalorder %s20, 1
      %p263 = scmp.ne.s32.totalorder %s258, %s260
      %p264 = scmp.eq.s32.totalorder %s20, 0
      %p265 = por %p263, %p264
      %p266 = scmp.ne.s32.totalorder %s258, %s260
      %p267 = scmp.eq.s32.totalorder %s25, 1
      %p268 = por %p266, %p267
      %p269 = scmp.ne.s32.totalorder %s260, %s261
      %p270 = scmp.eq.s32.totalorder %s25, 0
      %p271 = por %p269, %p270
      %p272 = scmp.ne.s32.totalorder %s260, %s261
      %p273 = scmp.eq.s32.totalorder %s26, 1
      %p274 = por %p272, %p273
      %p276 = scmp.ne.s32.totalorder %s261, %s275
      %p277 = scmp.eq.s32.totalorder %s26, 0
      %p278 = por %p276, %p277
      %s280 = sadd.s32 %s279, 1
      %p283 = scmp.eq.s32.totalorder %s20, 1
      %p284 = scmp.ne.s32.totalorder %s279, %s281
      %p285 = scmp.eq.s32.totalorder %s20, 0
      %p286 = por %p284, %p285
      %p287 = scmp.ne.s32.totalorder %s279, %s281
      %p288 = scmp.eq.s32.totalorder %s25, 1
      %p289 = por %p287, %p288
      %p290 = scmp.ne.s32.totalorder %s281, %s282
      %p291 = scmp.eq.s32.totalorder %s25, 0
      %p292 = por %p290, %p291
      %p293 = scmp.ne.s32.totalorder %s281, %s282
      %p294 = scmp.eq.s32.totalorder %s26, 1
      %p295 = por %p293, %p294
      %p297 = scmp.ne.s32.totalorder %s282, %s296
      %p298 = scmp.eq.s32.totalorder %s26, 0
      %p299 = por %p297, %p298
      %s301 = sadd.s32 %s300, 1
      %p304 = scmp.eq.s32.totalorder %s20, 1
      %p305 = scmp.ne.s32.totalorder %s300, %s302
      %p306 = scmp.eq.s32.totalorder %s20, 0
      %p307 = por %p305, %p306
      %p308 = scmp.ne.s32.totalorder %s300, %s302
      %p309 = scmp.eq.s32.totalorder %s25, 1
      %p310 = por %p308, %p309
      %p311 = scmp.ne.s32.totalorder %s302, %s303
      %p312 = scmp.eq.s32.totalorder %s25, 0
      %p313 = por %p311, %p312
      %p314 = scmp.ne.s32.totalorder %s302, %s303
      %p315 = scmp.eq.s32.totalorder %s26, 1
      %p316 = por %p314, %p315
      %p318 = scmp.ne.s32.totalorder %s303, %s317
      %p319 = scmp.eq.s32.totalorder %s26, 0
      %p320 = por %p318, %p319
      %s322 = sadd.s32 %s321, 1
      %p325 = scmp.eq.s32.totalorder %s20, 1
      %p326 = scmp.ne.s32.totalorder %s321, %s323
      %p327 = scmp.eq.s32.totalorder %s20, 0
      %p328 = por %p326, %p327
      %p329 = scmp.ne.s32.totalorder %s321, %s323
      %p330 = scmp.eq.s32.totalorder %s25, 1
      %p331 = por %p329, %p330
      %p332 = scmp.ne.s32.totalorder %s323, %s324
      %p333 = scmp.eq.s32.totalorder %s25, 0
      %p334 = por %p332, %p333
      %p335 = scmp.ne.s32.totalorder %s323, %s324
      %p336 = scmp.eq.s32.totalorder %s26, 1
      %p337 = por %p335, %p336
      %p339 = scmp.ne.s32.totalorder %s324, %s338
      %p340 = scmp.eq.s32.totalorder %s26, 0
      %p341 = por %p339, %p340
      %s342 = ssub.s32 %s20, %s27
      %p343 = scmp.eq.s32.totalorder %s342, 0
      %s345 = sadd.s32 %s344, 1
      %s346 = scalar_select %p343, %s344, %s345
      %p349 = pneg %p343
      %p350 = scmp.eq.s32.totalorder %s20, 1
      %p351 = por %p349, %p350
      %p352 = scmp.ne.s32.totalorder %s344, %s347
      %p353 = scmp.eq.s32.totalorder %s20, 0
      %p354 = por %p352, %p353
      %p355 = scmp.ne.s32.totalorder %s344, %s347
      %p356 = scmp.eq.s32.totalorder %s25, 1
      %p357 = por %p355, %p356
      %p358 = scmp.ne.s32.totalorder %s347, %s348
      %p359 = scmp.eq.s32.totalorder %s25, 0
      %p360 = por %p358, %p359
      %p361 = scmp.ne.s32.totalorder %s347, %s348
      %p362 = scmp.eq.s32.totalorder %s26, 1
      %p363 = por %p361, %p362
      %p365 = scmp.ne.s32.totalorder %s348, %s364
      %p366 = scmp.eq.s32.totalorder %s26, 0
      %p367 = por %p365, %p366
      %p368 = scmp.le.s32.totalorder 1, %s20
      %p369 = scmp.lt.s32.totalorder %s20, 3
      %p370 = pnand %p368, %p369
      %p371 = pneg %p370
      // Predicated region
      $region9: #{conditional_classifier_forward.1} parent=5 // pred_check
        _
      $region10: #{conditional_classifier_forward.1} parent=5 // pred_check_branch
        %373 = sbr.rel (%p370) target = $region12
      $region11: #{conditional_classifier_forward.1} parent=5 // pred_region
        %s374 = ssub.s32 %s20, 1
        // Predicated region
        $region13: #{conditional_classifier_forward.1} parent=11 // pred_check
          %p375 = pneg %p145
        $region14: #{conditional_classifier_forward.1} parent=11 // pred_check_branch
          %377 = sbr.rel (%p375) target = $region16
        $region15: #{conditional_classifier_forward.1} parent=11 // pred_region
          _
        $region16: #{conditional_classifier_forward.1} parent=11 // pred_fallthru
          _
        // Predicated region
        $region17: #{conditional_classifier_forward.1} parent=11 // pred_check
          %p378 = pneg %p166
        $region18: #{conditional_classifier_forward.1} parent=11 // pred_check_branch
          %380 = sbr.rel (%p378) target = $region20
        $region19: #{conditional_classifier_forward.1} parent=11 // pred_region
          _
        $region20: #{conditional_classifier_forward.1} parent=11 // pred_fallthru
          _
        // Predicated region
        $region21: #{conditional_classifier_forward.1} parent=11 // pred_check
          %p381 = pneg %p187
        $region22: #{conditional_classifier_forward.1} parent=11 // pred_check_branch
          %383 = sbr.rel (%p381) target = $region24
        $region23: #{conditional_classifier_forward.1} parent=11 // pred_region
          _
        $region24: #{conditional_classifier_forward.1} parent=11 // pred_fallthru
          _
        // Predicated region
        $region25: #{conditional_classifier_forward.1} parent=11 // pred_check
          %p384 = pneg %p208
        $region26: #{conditional_classifier_forward.1} parent=11 // pred_check_branch
          %386 = sbr.rel (%p384) target = $region28
        $region27: #{conditional_classifier_forward.1} parent=11 // pred_region
          _
        $region28: #{conditional_classifier_forward.1} parent=11 // pred_fallthru
          _
        // Predicated region
        $region29: #{conditional_classifier_forward.1} parent=11 // pred_check
          %p387 = pneg %p229
        $region30: #{conditional_classifier_forward.1} parent=11 // pred_check_branch
          %389 = sbr.rel (%p387) target = $region32
        $region31: #{conditional_classifier_forward.1} parent=11 // pred_region
          _
        $region32: #{conditional_classifier_forward.1} parent=11 // pred_fallthru
          _
        // Predicated region
        $region33: #{conditional_classifier_forward.1} parent=11 // pred_check
          %p390 = pneg %p250
        $region34: #{conditional_classifier_forward.1} parent=11 // pred_check_branch
          %392 = sbr.rel (%p390) target = $region36
        $region35: #{conditional_classifier_forward.1} parent=11 // pred_region
          _
        $region36: #{conditional_classifier_forward.1} parent=11 // pred_fallthru
          _
        // Predicated region
        $region37: #{conditional_classifier_forward.1} parent=11 // pred_check
          %p393 = pneg %p271
        $region38: #{conditional_classifier_forward.1} parent=11 // pred_check_branch
          %395 = sbr.rel (%p393) target = $region40
        $region39: #{conditional_classifier_forward.1} parent=11 // pred_region
          _
        $region40: #{conditional_classifier_forward.1} parent=11 // pred_fallthru
          _
        // Predicated region
        $region41: #{conditional_classifier_forward.1} parent=11 // pred_check
          %p396 = pneg %p292
        $region42: #{conditional_classifier_forward.1} parent=11 // pred_check_branch
          %398 = sbr.rel (%p396) target = $region44
        $region43: #{conditional_classifier_forward.1} parent=11 // pred_region
          _
        $region44: #{conditional_classifier_forward.1} parent=11 // pred_fallthru
          _
        // Predicated region
        $region45: #{conditional_classifier_forward.1} parent=11 // pred_check
          %p399 = pneg %p313
        $region46: #{conditional_classifier_forward.1} parent=11 // pred_check_branch
          %401 = sbr.rel (%p399) target = $region48
        $region47: #{conditional_classifier_forward.1} parent=11 // pred_region
          _
        $region48: #{conditional_classifier_forward.1} parent=11 // pred_fallthru
          _
        // Predicated region
        $region49: #{conditional_classifier_forward.1} parent=11 // pred_check
          %p402 = pneg %p334
        $region50: #{conditional_classifier_forward.1} parent=11 // pred_check_branch
          %404 = sbr.rel (%p402) target = $region52
        $region51: #{conditional_classifier_forward.1} parent=11 // pred_region
          _
        $region52: #{conditional_classifier_forward.1} parent=11 // pred_fallthru
          _
      $region12: #{conditional_classifier_forward.1} parent=5 // pred_fallthru
        _
      %p405 = scmp.lt.s32.totalorder %s20, 2
      // Predicated region
      $region53: #{conditional_classifier_forward.1} parent=5 // pred_check
        %p406 = pneg %p405
      $region54: #{conditional_classifier_forward.1} parent=5 // pred_check_branch
        %408 = sbr.rel (%p406) target = $region56
      $region55: #{conditional_classifier_forward.1} parent=5 // pred_region
        // Predicated region
        $region57: #{conditional_classifier_forward.1} parent=55 // pred_check
          %p409 = pneg %p40
        $region58: #{conditional_classifier_forward.1} parent=55 // pred_check_branch
          %411 = sbr.rel (%p409) target = $region60
        $region59: #{conditional_classifier_forward.1} parent=55 // pred_region
          %s412 = smul.u32 2, %s20
          %s413 = ssub.s32 3, %s412
          %p414 = scmp.lt.s32.totalorder %s413, 2
          %s415 = scalar_select %p414, %s413, 2
          %s416 = smul.u32 8, %s415
          %p417 = scmp.lt.s32.totalorder %s412, 2
          %s418 = scalar_select %p417, %s412, 2
          %s419 = smul.addr %s418, 8
          %s420 = scalar_lea.vmem %s0, %s419
          %s421 = smul.u32 2, %s20
          %s422 = ssub.s32 3, %s421
          %p423 = scmp.lt.s32.totalorder %s422, 2
          %s424 = scalar_select %p423, %s422, 2
          %s425 = smul.u32 8, %s424
        $region60: #{conditional_classifier_forward.1} parent=55 // pred_fallthru
          _
        // Predicated region
        $region61: #{conditional_classifier_forward.1} parent=55 // pred_check
          %p426 = pneg %p66
        $region62: #{conditional_classifier_forward.1} parent=55 // pred_check_branch
          %428 = sbr.rel (%p426) target = $region64
        $region63: #{conditional_classifier_forward.1} parent=55 // pred_region
          %s429 = smul.u32 2, %s20
          %s430 = ssub.s32 3, %s429
          %p431 = scmp.lt.s32.totalorder %s430, 2
          %s432 = scalar_select %p431, %s430, 2
          %s433 = smul.u32 8, %s432
          %p434 = scmp.lt.s32.totalorder %s429, 2
          %s435 = scalar_select %p434, %s429, 2
          %s436 = smul.addr %s435, 8
          %s437 = scalar_lea.vmem %s1, %s436
          %s438 = smul.u32 2, %s20
          %s439 = ssub.s32 3, %s438
          %p440 = scmp.lt.s32.totalorder %s439, 2
          %s441 = scalar_select %p440, %s439, 2
          %s442 = smul.u32 8, %s441
        $region64: #{conditional_classifier_forward.1} parent=55 // pred_fallthru
          _
        // Predicated region
        $region65: #{conditional_classifier_forward.1} parent=55 // pred_check
          %p443 = pneg %p92
        $region66: #{conditional_classifier_forward.1} parent=55 // pred_check_branch
          %445 = sbr.rel (%p443) target = $region68
        $region67: #{conditional_classifier_forward.1} parent=55 // pred_region
          %s446 = smul.u32 2, %s20
          %s447 = ssub.s32 3, %s446
          %p448 = scmp.lt.s32.totalorder %s447, 2
          %s449 = scalar_select %p448, %s447, 2
          %s450 = smul.u32 8, %s449
          %p451 = scmp.lt.s32.totalorder %s446, 2
          %s452 = scalar_select %p451, %s446, 2
          %s453 = smul.addr %s452, 8
          %s454 = scalar_lea.vmem %s2, %s453
          %s455 = smul.u32 2, %s20
          %s456 = ssub.s32 3, %s455
          %p457 = scmp.lt.s32.totalorder %s456, 2
          %s458 = scalar_select %p457, %s456, 2
          %s459 = smul.u32 8, %s458
        $region68: #{conditional_classifier_forward.1} parent=55 // pred_fallthru
          _
        // Predicated region
        $region69: #{conditional_classifier_forward.1} parent=55 // pred_check
          %p460 = pneg %p118
        $region70: #{conditional_classifier_forward.1} parent=55 // pred_check_branch
          %462 = sbr.rel (%p460) target = $region72
        $region71: #{conditional_classifier_forward.1} parent=55 // pred_region
          %s463 = smul.u32 2, %s20
          %s464 = ssub.s32 3, %s463
          %p465 = scmp.lt.s32.totalorder %s464, 2
          %s466 = scalar_select %p465, %s464, 2
          %s467 = smul.u32 8, %s466
          %p468 = scmp.lt.s32.totalorder %s463, 2
          %s469 = scalar_select %p468, %s463, 2
          %s470 = smul.addr %s469, 8
          %s471 = scalar_lea.vmem %s3, %s470
          %s472 = smul.u32 2, %s20
          %s473 = ssub.s32 3, %s472
          %p474 = scmp.lt.s32.totalorder %s473, 2
          %s475 = scalar_select %p474, %s473, 2
          %s476 = smul.u32 8, %s475
        $region72: #{conditional_classifier_forward.1} parent=55 // pred_fallthru
          _
      $region56: #{conditional_classifier_forward.1} parent=5 // pred_fallthru
        _
      %p477 = scmp.le.s32.totalorder 1, %s20
      %p478 = scmp.lt.s32.totalorder %s20, 3
      %p479 = pnand %p477, %p478
      %p480 = pneg %p479
      // Predicated region
      $region73: #{conditional_classifier_forward.1} parent=5 // pred_check
        _
      $region74: #{conditional_classifier_forward.1} parent=5 // pred_check_branch
        %482 = sbr.rel (%p479) target = $region76
      $region75: #{conditional_classifier_forward.1} parent=5 // pred_region
        %s483 = ssub.s32 %s20, 1
        %s484 = smul.u32 2, %s25
        %s485 = ssub.s32 3, %s484
        %p486 = scmp.lt.s32.totalorder %s485, 2
        %s487 = scalar_select %p486, %s485, 2
        %s488 = smul.u32 8, %s487
        %p489 = scmp.lt.s32.totalorder %s484, 2
        %s490 = scalar_select %p489, %s484, 2
        %s491 = smul.addr %s490, 8
        %s492 = scalar_lea.vmem %s0, %s491
        %p493 = pneg %p46
        %p494 = pneg %p43
        %s495 = smul.u32 2, %s25
        %s496 = ssub.s32 3, %s495
        %p497 = scmp.lt.s32.totalorder %s496, 2
        %s498 = scalar_select %p497, %s496, 2
        %s499 = smul.u32 8, %s498
        %p500 = scmp.lt.s32.totalorder %s495, 2
        %s501 = scalar_select %p500, %s495, 2
        %s502 = smul.addr %s501, 8
        %s503 = scalar_lea.vmem %s1, %s502
        %p504 = pneg %p72
        %p505 = pneg %p69
        %s506 = smul.u32 2, %s25
        %s507 = ssub.s32 3, %s506
        %p508 = scmp.lt.s32.totalorder %s507, 2
        %s509 = scalar_select %p508, %s507, 2
        %s510 = smul.u32 8, %s509
        %p511 = scmp.lt.s32.totalorder %s506, 2
        %s512 = scalar_select %p511, %s506, 2
        %s513 = smul.addr %s512, 8
        %s514 = scalar_lea.vmem %s2, %s513
        %p515 = pneg %p98
        %p516 = pneg %p95
        %s517 = smul.u32 2, %s25
        %s518 = ssub.s32 3, %s517
        %p519 = scmp.lt.s32.totalorder %s518, 2
        %s520 = scalar_select %p519, %s518, 2
        %s521 = smul.u32 8, %s520
        %p522 = scmp.lt.s32.totalorder %s517, 2
        %s523 = scalar_select %p522, %s517, 2
        %s524 = smul.addr %s523, 8
        %s525 = scalar_lea.vmem %s3, %s524
        %p526 = pneg %p124
        %p527 = pneg %p121
        %p528 = pneg %p145
        %p529 = pneg %p142
        %p530 = pneg %p166
        %p531 = pneg %p163
        %p532 = pneg %p187
        %p533 = pneg %p184
        %p534 = pneg %p208
        %p535 = pneg %p205
        %p536 = pneg %p229
        %p537 = pneg %p226
        %p538 = pneg %p250
        %p539 = pneg %p247
        %p540 = pneg %p271
        %p541 = pneg %p268
        %p542 = pneg %p292
        %p543 = pneg %p289
        %p544 = pneg %p313
        %p545 = pneg %p310
        %p546 = pneg %p334
        %p547 = pneg %p331
        %p548 = pneg %p360
        %p549 = pneg %p357
        %s550 = sand.u32 %s347, 1
        %s551 = sand.u32 %s347, 1
        %s552 = smul.addr %s551, 16
        %s553 = scalar_lea.vmem [#allocation2], %s552
        %s554 = smul.u32 2, %s25
        %s555 = ssub.s32 3, %s554
        %p556 = scmp.lt.s32.totalorder %s555, 2
        %s557 = scalar_select %p556, %s555, 2
        %s558 = smul.u32 8, %s557
        %p559 = scmp.lt.s32.totalorder %s554, 2
        %s560 = scalar_select %p559, %s554, 2
        %s561 = smul.addr %s560, 8
        %s562 = scalar_lea.vmem %s0, %s561
        %s563 = smul.u32 2, %s25
        %s564 = ssub.s32 3, %s563
        %p565 = scmp.lt.s32.totalorder %s564, 2
        %s566 = scalar_select %p565, %s564, 2
        %s567 = smul.u32 8, %s566
        %s568 = smul.u32 2, %s25
        %s569 = ssub.s32 3, %s568
        %p570 = scmp.lt.s32.totalorder %s569, 2
        %s571 = scalar_select %p570, %s569, 2
        %s572 = smul.u32 8, %s571
        %p573 = scmp.lt.s32.totalorder %s568, 2
        %s574 = scalar_select %p573, %s568, 2
        %s575 = smul.addr %s574, 8
        %s576 = scalar_lea.vmem %s1, %s575
        %s577 = smul.u32 2, %s25
        %s578 = ssub.s32 3, %s577
        %p579 = scmp.lt.s32.totalorder %s578, 2
        %s580 = scalar_select %p579, %s578, 2
        %s581 = smul.u32 8, %s580
        %s582 = smul.u32 2, %s25
        %s583 = ssub.s32 3, %s582
        %p584 = scmp.lt.s32.totalorder %s583, 2
        %s585 = scalar_select %p584, %s583, 2
        %s586 = smul.u32 8, %s585
        %p587 = scmp.lt.s32.totalorder %s582, 2
        %s588 = scalar_select %p587, %s582, 2
        %s589 = smul.addr %s588, 8
        %s590 = scalar_lea.vmem %s2, %s589
        %s591 = smul.u32 2, %s25
        %s592 = ssub.s32 3, %s591
        %p593 = scmp.lt.s32.totalorder %s592, 2
        %s594 = scalar_select %p593, %s592, 2
        %s595 = smul.u32 8, %s594
        %s596 = smul.u32 2, %s25
        %s597 = ssub.s32 3, %s596
        %p598 = scmp.lt.s32.totalorder %s597, 2
        %s599 = scalar_select %p598, %s597, 2
        %s600 = smul.u32 8, %s599
        %p601 = scmp.lt.s32.totalorder %s596, 2
        %s602 = scalar_select %p601, %s596, 2
        %s603 = smul.addr %s602, 8
        %s604 = scalar_lea.vmem %s3, %s603
        %s605 = smul.u32 2, %s25
        %s606 = ssub.s32 3, %s605
        %p607 = scmp.lt.s32.totalorder %s606, 2
        %s608 = scalar_select %p607, %s606, 2
        %s609 = smul.u32 8, %s608
        %s610 = smul.u32 2, %s25
        %s611 = ssub.s32 3, %s610
        %p612 = scmp.lt.s32.totalorder %s611, 2
        %s613 = scalar_select %p612, %s611, 2
        %s614 = smul.u32 8, %s613
        %v615 = vlaneseq
        %v616 = vand.u32 %v615, 127
        %v617 = vld [vmem:[%s604] sm:$0xff]
        %v618 = vld [vmem:[%s604 + $0x8] sm:$0xff]
        %619 = vset.pattern.permute.xlu0 0
        %620 = vperm.xlu0 %619, %v617
        %v621 = vpop.permute.xlu0 %620
        %622 = vset.pattern.permute.xlu0 0
        %623 = vperm.xlu0 %622, %v618
        %v624 = vpop.permute.xlu0 %623
        %vm625 = vcmp.eq.s32.totalorder %v616, %v621
        %vm626 = vcmp.eq.s32.totalorder %v616, %v624
        %v627 = vsel %vm625, 1, 0
        %v628 = vsel %vm626, 1, 0
        %v629 = vcvt.s32.f32 %v627
        %v630 = vcvt.s32.f32 %v628
        %v631 = vld [vmem:[%s8] sm:$0xff]
        %v632 = vld [vmem:[%s8 + $0x8] sm:$0x3]
        %vm633 = vcmask 80896
        %v635 = vsel %vm633, %v629, 0
        %v638 = vsel %vm633, %v630, 0
        %vm640 = vcmask 1041408
        %v642 = vsel %vm640, %v632, 0
        %644 = vmatpush.msra.mxu0 0.0
        %645 = vmatpush.msra.mxu0 0.0
        %646 = vmatpush.msra.mxu0 0.0
        %647 = vmatpush.msra.mxu0 0.0
        %648 = vmatpush.msra.mxu0 0.0
        %649 = vmatpush.msra.mxu0 0.0
        %650 = vmatpush.msra.mxu0 0.0
        %651 = vmatpush.msra.mxu0 0.0
        %652 = vmatpush.msra.mxu0 0.0
        %653 = vmatpush.msra.mxu0 0.0
        %654 = vmatpush.msra.mxu0 0.0
        %655 = vmatpush.msra.mxu0 0.0
        %656 = vmatpush.msra.mxu0 0.0
        %657 = vmatpush.msra.mxu0 0.0
        %658 = vmatpush.msra.mxu0 %v642
        %659 = vmatpush.msra.mxu0 %v631
        %660 = vmatmul.f32.gmra.mxu0 %v635
        %v661 = vpop.f32.mrf.mxu0
        %v662 = vadd.f32 0.0, %v661
        %663 = vmatmul.f32.gmra.mxu0 %v638
        %v664 = vpop.f32.mrf.mxu0
        %v665 = vadd.f32 0.0, %v664
        %666 = vdwg.mxu0
        %v667 = vld [vmem:[%s11] sm:$0xff]
        %v668 = vld [vmem:[%s11 + $0x8] sm:$0x3]
        %v670 = vsel %vm640, %v668, 0
        %672 = vmatpush.msra.mxu0 0.0
        %673 = vmatpush.msra.mxu0 0.0
        %674 = vmatpush.msra.mxu0 0.0
        %675 = vmatpush.msra.mxu0 0.0
        %676 = vmatpush.msra.mxu0 0.0
        %677 = vmatpush.msra.mxu0 0.0
        %678 = vmatpush.msra.mxu0 0.0
        %679 = vmatpush.msra.mxu0 0.0
        %680 = vmatpush.msra.mxu0 0.0
        %681 = vmatpush.msra.mxu0 0.0
        %682 = vmatpush.msra.mxu0 0.0
        %683 = vmatpush.msra.mxu0 0.0
        %684 = vmatpush.msra.mxu0 0.0
        %685 = vmatpush.msra.mxu0 0.0
        %686 = vmatpush.msra.mxu0 %v670
        %687 = vmatpush.msra.mxu0 %v667
        %688 = vmatmul.f32.gmra.mxu0 %v635
        %v689 = vpop.f32.mrf.mxu0
        %v690 = vadd.f32 0.0, %v689
        %691 = vmatmul.f32.gmra.mxu0 %v638
        %v692 = vpop.f32.mrf.mxu0
        %v693 = vadd.f32 0.0, %v692
        %694 = vdwg.mxu0
        %v695 = vld [vmem:[%s562] sm:$0xff]
        %v696 = vld [vmem:[%s562 + $0x8] sm:$0xff]
        %v697 = vld [vmem:[%s4] sm:$0xf]
        %v698 = vld [vmem:[%s576] sm:$0xff]
        %v699 = vld [vmem:[%s576 + $0x8] sm:$0xff]
        %v700 = vld [vmem:[%s5] sm:$0xf]
        %vm701 = vcmask 31744
        %v703 = vsel %vm701, %v698, 0
        %v706 = vsel %vm701, %v699, 0
        %vm708 = vcmask 1043456
        %v710 = vsel %vm708, %v700, 0
        %712 = vmatpush.msra.mxu0 0.0
        %713 = vmatpush.msra.mxu0 0.0
        %714 = vmatpush.msra.mxu0 0.0
        %715 = vmatpush.msra.mxu0 0.0
        %716 = vmatpush.msra.mxu0 0.0
        %717 = vmatpush.msra.mxu0 0.0
        %718 = vmatpush.msra.mxu0 0.0
        %719 = vmatpush.msra.mxu0 0.0
        %720 = vmatpush.msra.mxu0 0.0
        %721 = vmatpush.msra.mxu0 0.0
        %722 = vmatpush.msra.mxu0 0.0
        %723 = vmatpush.msra.mxu0 0.0
        %724 = vmatpush.msra.mxu0 0.0
        %725 = vmatpush.msra.mxu0 0.0
        %726 = vmatpush.msra.mxu0 0.0
        %727 = vmatpush.msra.mxu0 %v710
        %728 = vmatmul.f32.gmra.mxu0 %v703
        %v729 = vpop.f32.mrf.mxu0
        %v730 = vadd.f32 0.0, %v729
        %731 = vmatmul.f32.gmra.mxu0 %v706
        %v732 = vpop.f32.mrf.mxu0
        %v733 = vadd.f32 0.0, %v732
        %734 = vdwg.mxu0
        %v736 = vsel %vm701, %v695, 0
        %v739 = vsel %vm701, %v696, 0
        %v742 = vsel %vm708, %v697, 0
        %744 = vmatpush.msra.mxu0 0.0
        %745 = vmatpush.msra.mxu0 0.0
        %746 = vmatpush.msra.mxu0 0.0
        %747 = vmatpush.msra.mxu0 0.0
        %748 = vmatpush.msra.mxu0 0.0
        %749 = vmatpush.msra.mxu0 0.0
        %750 = vmatpush.msra.mxu0 0.0
        %751 = vmatpush.msra.mxu0 0.0
        %752 = vmatpush.msra.mxu0 0.0
        %753 = vmatpush.msra.mxu0 0.0
        %754 = vmatpush.msra.mxu0 0.0
        %755 = vmatpush.msra.mxu0 0.0
        %756 = vmatpush.msra.mxu0 0.0
        %757 = vmatpush.msra.mxu0 0.0
        %758 = vmatpush.msra.mxu0 0.0
        %759 = vmatpush.msra.mxu0 %v742
        %760 = vmatmul.f32.gmra.mxu0 %v736
        %v761 = vpop.f32.mrf.mxu0
        %v762 = vadd.f32 %v730, %v761
        %763 = vmatmul.f32.gmra.mxu0 %v739
        %v764 = vpop.f32.mrf.mxu0
        %v765 = vadd.f32 %v733, %v764
        %766 = vdwg.mxu0
        %v767 = vld [vmem:[%s590] sm:$0xff]
        %v768 = vld [vmem:[%s590 + $0x8] sm:$0xff]
        %v769 = vld [vmem:[%s6] sm:$0xff]
        %v770 = vld [vmem:[%s6 + $0x8] sm:$0xff]
        %vm771 = vcmask 130048
        %v773 = vsel %vm771, %v767, 0
        %v776 = vsel %vm771, %v768, 0
        %778 = vmatpush.msra.mxu0 0.0
        %779 = vmatpush.msra.mxu0 0.0
        %780 = vmatpush.msra.mxu0 0.0
        %781 = vmatpush.msra.mxu0 0.0
        %782 = vmatpush.msra.mxu0 0.0
        %783 = vmatpush.msra.mxu0 0.0
        %784 = vmatpush.msra.mxu0 0.0
        %785 = vmatpush.msra.mxu0 0.0
        %786 = vmatpush.msra.mxu0 0.0
        %787 = vmatpush.msra.mxu0 0.0
        %788 = vmatpush.msra.mxu0 0.0
        %789 = vmatpush.msra.mxu0 0.0
        %790 = vmatpush.msra.mxu0 0.0
        %791 = vmatpush.msra.mxu0 0.0
        %792 = vmatpush.msra.mxu0 %v770
        %793 = vmatpush.msra.mxu0 %v769
        %794 = vmatmul.f32.gmra.mxu0 %v773
        %v795 = vpop.f32.mrf.mxu0
        %v796 = vadd.f32 0.0, %v795
        %797 = vmatmul.f32.gmra.mxu0 %v776
        %v798 = vpop.f32.mrf.mxu0
        %v799 = vadd.f32 0.0, %v798
        %800 = vdwg.mxu0
        %v801 = vadd.f32 %v762, %v796
        %v802 = vadd.f32 %v765, %v799
        %v803 = vld [vmem:[%s7] sm:$0x1]
        %v805 = vperm.slane %v803, 0
        %v807 = vadd.f32 %v801, %v805
        %v808 = vadd.f32 %v802, %v805
        %v809 = vmul.f32 %v662, %v807
        %v810 = vmul.f32 %v665, %v808
        %v811 = vmin.f32 %v809, 20.0
        %v812 = vmin.f32 %v810, 20.0
        %vm813 = vcmp.gt.f32.partialorder %v809, 20.0
        %vm814 = vcmp.gt.f32.partialorder %v810, 20.0
        %v815 = vmul.f32 %v811, 1.442695
        %v816 = vpow.pop %v815
        %v817 = vmul.f32 %v812, 1.442695
        %v818 = vpow.pop %v817
        %v819 = vadd.f32 %v816, 1.0
        %v820 = vlog2.pop %v819
        %v821 = vmul.f32 %v820, 0.6931472
        %v822 = vmul.f32 -0.5, %v816
        %v823 = vadd.f32 %v822, 1.0
        %v824 = vmul.f32 %v823, %v816
        %v825 = vand.u32 2147483647, %v816
        %vm826 = vcmp.lt.f32.partialorder %v825, 0.0004427343
        %v827 = vsel %vm826, %v824, %v821
        %v828 = vadd.f32 %v818, 1.0
        %v829 = vlog2.pop %v828
        %v830 = vmul.f32 %v829, 0.6931472
        %v831 = vmul.f32 -0.5, %v818
        %v832 = vadd.f32 %v831, 1.0
        %v833 = vmul.f32 %v832, %v818
        %v834 = vand.u32 2147483647, %v818
        %vm835 = vcmp.lt.f32.partialorder %v834, 0.0004427343
        %v836 = vsel %vm835, %v833, %v830
        %v837 = vsel %vm813, %v809, %v827
        %v838 = vsel %vm814, %v810, %v836
        %v839 = vld [vmem:[%s9] sm:$0xff]
        %v840 = vld [vmem:[%s9 + $0x8] sm:$0xff]
        %v841 = vld [vmem:[%s9 + $0x10] sm:$0xff]
        %v842 = vld [vmem:[%s9 + $0x18] sm:$0xff]
        %v843 = vld [vmem:[%s10] sm:$0x1]
        %v845 = vperm.slane %v843, 0
        %vm847 = vcmask 261120
        %v849 = vsel %vm847, %v837, 0
        %v852 = vsel %vm847, %v838, 0
        %854 = vmatpush.msra.mxu0 0.0
        %855 = vmatpush.msra.mxu0 0.0
        %856 = vmatpush.msra.mxu0 0.0
        %857 = vmatpush.msra.mxu0 0.0
        %858 = vmatpush.msra.mxu0 0.0
        %859 = vmatpush.msra.mxu0 0.0
        %860 = vmatpush.msra.mxu0 0.0
        %861 = vmatpush.msra.mxu0 0.0
        %862 = vmatpush.msra.mxu0 0.0
        %863 = vmatpush.msra.mxu0 0.0
        %864 = vmatpush.msra.mxu0 0.0
        %865 = vmatpush.msra.mxu0 0.0
        %866 = vmatpush.msra.mxu0 %v842
        %867 = vmatpush.msra.mxu0 %v841
        %868 = vmatpush.msra.mxu0 %v840
        %869 = vmatpush.msra.mxu0 %v839
        %870 = vmatmul.f32.gmra.mxu0 %v849
        %v871 = vpop.f32.mrf.mxu0
        %v872 = vadd.f32 %v845, %v871
        %873 = vmatmul.f32.gmra.mxu0 %v852
        %v874 = vpop.f32.mrf.mxu0
        %v875 = vadd.f32 %v845, %v874
        %876 = vdwg.mxu0
        %v877 = vmul.f32 %v690, %v872
        %v878 = vmul.f32 %v693, %v875
        %v879 = vmin.f32 %v877, 20.0
        %v880 = vmin.f32 %v878, 20.0
        %vm881 = vcmp.gt.f32.partialorder %v877, 20.0
        %vm882 = vcmp.gt.f32.partialorder %v878, 20.0
        %v883 = vmul.f32 %v879, 1.442695
        %v884 = vpow.pop %v883
        %v885 = vmul.f32 %v880, 1.442695
        %v886 = vpow.pop %v885
        %v887 = vadd.f32 %v884, 1.0
        %v888 = vlog2.pop %v887
        %v889 = vmul.f32 %v888, 0.6931472
        %v890 = vmul.f32 -0.5, %v884
        %v891 = vadd.f32 %v890, 1.0
        %v892 = vmul.f32 %v891, %v884
        %v893 = vand.u32 2147483647, %v884
        %vm894 = vcmp.lt.f32.partialorder %v893, 0.0004427343
        %v895 = vsel %vm894, %v892, %v889
        %v896 = vadd.f32 %v886, 1.0
        %v897 = vlog2.pop %v896
        %v898 = vmul.f32 %v897, 0.6931472
        %v899 = vmul.f32 -0.5, %v886
        %v900 = vadd.f32 %v899, 1.0
        %v901 = vmul.f32 %v900, %v886
        %v902 = vand.u32 2147483647, %v886
        %vm903 = vcmp.lt.f32.partialorder %v902, 0.0004427343
        %v904 = vsel %vm903, %v901, %v898
        %v905 = vsel %vm881, %v877, %v895
        %v906 = vsel %vm882, %v878, %v904
        %v907 = vld [vmem:[%s12] sm:$0xff]
        %v908 = vld [vmem:[%s12 + $0x8] sm:$0xff]
        %v909 = vld [vmem:[%s12 + $0x10] sm:$0xff]
        %v910 = vld [vmem:[%s12 + $0x18] sm:$0xff]
        %v911 = vld [vmem:[%s13] sm:$0x1]
        %v913 = vperm.slane %v911, 0
        %v916 = vsel %vm847, %v905, 0
        %v919 = vsel %vm847, %v906, 0
        %921 = vmatpush.msra.mxu0 0.0
        %922 = vmatpush.msra.mxu0 0.0
        %923 = vmatpush.msra.mxu0 0.0
        %924 = vmatpush.msra.mxu0 0.0
        %925 = vmatpush.msra.mxu0 0.0
        %926 = vmatpush.msra.mxu0 0.0
        %927 = vmatpush.msra.mxu0 0.0
        %928 = vmatpush.msra.mxu0 0.0
        %929 = vmatpush.msra.mxu0 0.0
        %930 = vmatpush.msra.mxu0 0.0
        %931 = vmatpush.msra.mxu0 0.0
        %932 = vmatpush.msra.mxu0 0.0
        %933 = vmatpush.msra.mxu0 %v910
        %934 = vmatpush.msra.mxu0 %v909
        %935 = vmatpush.msra.mxu0 %v908
        %936 = vmatpush.msra.mxu0 %v907
        %937 = vmatmul.f32.gmra.mxu0 %v916
        %v938 = vpop.f32.mrf.mxu0
        %v939 = vadd.f32 %v913, %v938
        %940 = vmatmul.f32.gmra.mxu0 %v919
        %v941 = vpop.f32.mrf.mxu0
        %v942 = vadd.f32 %v913, %v941
        %943 = vdwg.mxu0
        %944 = vst.msk [vmem:[%s553] sm:$0xff] %vm701, %v939
        %945 = vst.msk [vmem:[%s553 + $0x8] sm:$0xff] %vm701, %v942
        %s946 = sand.u32 %s347, 1
        %s947 = sand.u32 %s347, 1
        %s948 = smul.addr %s947, 16
        %s949 = scalar_lea.vmem [#allocation2], %s948
        // Predicated region
        $region77: #{conditional_classifier_forward.1} parent=75 // pred_check
          %p950 = pneg %p357
        $region78: #{conditional_classifier_forward.1} parent=75 // pred_check_branch
          %952 = sbr.rel (%p950) target = $region80
        $region79: #{conditional_classifier_forward.1} parent=75 // pred_region
          %s953 = smul.u32 2, %s25
          %s954 = ssub.s32 3, %s953
          %p955 = scmp.lt.s32.totalorder %s954, 2
          %s956 = scalar_select %p955, %s954, 2
          %s957 = smul.u32 8, %s956
          %p958 = scmp.ne.s32.totalorder 0, %s957
          %s959 = smul.addr %s953, 8
          %s960 = scalar_lea.vmem %s14, %s959
          // Predicated region
          $region81: #{conditional_classifier_forward.1} parent=79 // pred_check
            %p961 = pneg %p958
          $region82: #{conditional_classifier_forward.1} parent=79 // pred_check_branch
            %963 = sbr.rel (%p961) target = $region84
          $region83: #{conditional_classifier_forward.1} parent=79 // pred_region
            // Predicated region
            $region85: #{conditional_classifier_forward.1} parent=83 // pred_check
              _
            $region86: #{conditional_classifier_forward.1} parent=83 // pred_check_branch
              %965 = sbr.rel (0) target = $region88
            $region87: #{conditional_classifier_forward.1} parent=83 // pred_region
              // Predicated region
              $region107: #{conditional_classifier_forward.1} parent=87 // pred_check
                _
              $region108: #{conditional_classifier_forward.1} parent=87 // pred_check_branch
                %1017 = sbr.rel (0) target = $region110
              $region109: #{conditional_classifier_forward.1} parent=87 // pred_region
                %s1018 = sshrl.u32 %s956, 1
                // While loop
                $region111: #{conditional_classifier_forward.1} parent=109 // loop_pre_header
                  _
                $region112: #{conditional_classifier_forward.1} parent=109 // loop_header
                  %s1020 = sphi 0, %s1022
                  %p1021 = scmp.ge.s32.totalorder %s1020, %s1018
                  %s1025 = sphi 0, %s1034
                  %s1026 = sphi %s949, %s1037
                  %s1027 = sphi %s960, %s1038
                $region113: #{conditional_classifier_forward.1} parent=109 // loop_header_branch
                  %1024 = sbr.rel (%p1021) target = $region117
                $region114: #{conditional_classifier_forward.1} parent=109 // loop_body
                  %v1028 = vld [vmem:[%s1026] sm:$0xff]
                  %1029 = vst [vmem:[%s1027] sm:$0xff] %v1028
                  %v1030 = vld [vmem:[%s1026 + $0x8] sm:$0xff]
                  %1031 = vst [vmem:[%s1027 + $0x8] sm:$0xff] %v1030
                  %s1032 = sadd.s32 1, %s1025
                  %p1033 = scmp.ge.s32.totalorder %s1032, %s1018
                  %s1034 = scalar_select %p1033, 0, %s1032
                  %s1035 = smul.u32 %s1034, 16
                  %s1036 = smul.u32 %s1034, 16
                  %s1037 = scalar_lea.vmem %s949, %s1035 [#allocation2]
                  %s1038 = scalar_lea.vmem %s960, %s1036
                $region115: #{conditional_classifier_forward.1} parent=109 // loop_footer
                  %s1022 = sadd.s32 %s1020, 1
                $region116: #{conditional_classifier_forward.1} parent=109 // loop_footer_branch
                  %1019 = sbr.rel target = $region112
                $region117: #{conditional_classifier_forward.1} parent=109 // loop_exit
                  _
                %s1039 = sshrl.u32 %s956, 1
                %s1040 = sand.u32 %s956, 1
                %s1041 = smul.u32 %s1039, 2
                %s1042 = smul.u32 8, %s1041
                %s1043 = scalar_lea.vmem %s949, %s1042 [#allocation2]
                %s1044 = smul.u32 8, %s1041
                %s1045 = scalar_lea.vmem %s960, %s1044
                // While loop
                $region118: #{conditional_classifier_forward.1} parent=109 // loop_pre_header
                  _
                $region119: #{conditional_classifier_forward.1} parent=109 // loop_header
                  %s1047 = sphi 0, %s1049
                  %p1048 = scmp.ge.s32.totalorder %s1047, %s1040
                  %s1052 = sphi 0, %s1059
                  %s1053 = sphi %s1043, %s1062
                  %s1054 = sphi %s1045, %s1063
                $region120: #{conditional_classifier_forward.1} parent=109 // loop_header_branch
                  %1051 = sbr.rel (%p1048) target = $region124
                $region121: #{conditional_classifier_forward.1} parent=109 // loop_body
                  %v1055 = vld [vmem:[%s1053] sm:$0xff]
                  %1056 = vst [vmem:[%s1054] sm:$0xff] %v1055
                  %s1057 = sadd.s32 1, %s1052
                  %p1058 = scmp.ge.s32.totalorder %s1057, %s1040
                  %s1059 = scalar_select %p1058, 0, %s1057
                  %s1060 = smul.u32 %s1059, 8
                  %s1061 = smul.u32 %s1059, 8
                  %s1062 = scalar_lea.vmem %s1043, %s1060 [#allocation2]
                  %s1063 = scalar_lea.vmem %s1045, %s1061
                $region122: #{conditional_classifier_forward.1} parent=109 // loop_footer
                  %s1049 = sadd.s32 %s1047, 1
                $region123: #{conditional_classifier_forward.1} parent=109 // loop_footer_branch
                  %1046 = sbr.rel target = $region119
                $region124: #{conditional_classifier_forward.1} parent=109 // loop_exit
                  _
              $region110: #{conditional_classifier_forward.1} parent=87 // pred_fallthru
                _
              // Predicated region
              $region125: #{conditional_classifier_forward.1} parent=87 // pred_check
                _
              $region126: #{conditional_classifier_forward.1} parent=87 // pred_check_branch
                %1065 = sbr.rel target = $region128
              $region127: #{conditional_classifier_forward.1} parent=87 // pred_region
                _
              $region128: #{conditional_classifier_forward.1} parent=87 // pred_fallthru
                _
            $region88: #{conditional_classifier_forward.1} parent=83 // pred_fallthru
              _
            // Predicated region
            $region89: #{conditional_classifier_forward.1} parent=83 // pred_check
              _
            $region90: #{conditional_classifier_forward.1} parent=83 // pred_check_branch
              %967 = sbr.rel target = $region92
            $region91: #{conditional_classifier_forward.1} parent=83 // pred_region
              %s969 = ssub.s32 256, 1
              %s970 = sshrl.u32 %s956, 1
              // While loop
              $region93: #{conditional_classifier_forward.1} parent=91 // loop_pre_header
                _
              $region94: #{conditional_classifier_forward.1} parent=91 // loop_header
                %s972 = sphi 0, %s974
                %p973 = scmp.ge.s32.totalorder %s972, %s970
                %s977 = sphi 0, %s986
                %s978 = sphi %s949, %s989
                %s979 = sphi %s960, %s990
              $region95: #{conditional_classifier_forward.1} parent=91 // loop_header_branch
                %976 = sbr.rel (%p973) target = $region99
              $region96: #{conditional_classifier_forward.1} parent=91 // loop_body
                %v980 = vld [vmem:[%s978] sm:%s969]
                %981 = vst [vmem:[%s979] sm:%s969] %v980
                %v982 = vld [vmem:[%s978 + $0x8] sm:%s969]
                %983 = vst [vmem:[%s979 + $0x8] sm:%s969] %v982
                %s984 = sadd.s32 1, %s977
                %p985 = scmp.ge.s32.totalorder %s984, %s970
                %s986 = scalar_select %p985, 0, %s984
                %s987 = smul.u32 %s986, 16
                %s988 = smul.u32 %s986, 16
                %s989 = scalar_lea.vmem %s949, %s987 [#allocation2]
                %s990 = scalar_lea.vmem %s960, %s988
              $region97: #{conditional_classifier_forward.1} parent=91 // loop_footer
                %s974 = sadd.s32 %s972, 1
              $region98: #{conditional_classifier_forward.1} parent=91 // loop_footer_branch
                %971 = sbr.rel target = $region94
              $region99: #{conditional_classifier_forward.1} parent=91 // loop_exit
                _
              %s991 = sshrl.u32 %s956, 1
              %s992 = sand.u32 %s956, 1
              %s993 = smul.u32 %s991, 2
              %s994 = smul.u32 8, %s993
              %s995 = scalar_lea.vmem %s949, %s994 [#allocation2]
              %s996 = smul.u32 8, %s993
              %s997 = scalar_lea.vmem %s960, %s996
              // While loop
              $region100: #{conditional_classifier_forward.1} parent=91 // loop_pre_header
                _
              $region101: #{conditional_classifier_forward.1} parent=91 // loop_header
                %s999 = sphi 0, %s1001
                %p1000 = scmp.ge.s32.totalorder %s999, %s992
                %s1004 = sphi 0, %s1011
                %s1005 = sphi %s995, %s1014
                %s1006 = sphi %s997, %s1015
              $region102: #{conditional_classifier_forward.1} parent=91 // loop_header_branch
                %1003 = sbr.rel (%p1000) target = $region106
              $region103: #{conditional_classifier_forward.1} parent=91 // loop_body
                %v1007 = vld [vmem:[%s1005] sm:%s969]
                %1008 = vst [vmem:[%s1006] sm:%s969] %v1007
                %s1009 = sadd.s32 1, %s1004
                %p1010 = scmp.ge.s32.totalorder %s1009, %s992
                %s1011 = scalar_select %p1010, 0, %s1009
                %s1012 = smul.u32 %s1011, 8
                %s1013 = smul.u32 %s1011, 8
                %s1014 = scalar_lea.vmem %s995, %s1012 [#allocation2]
                %s1015 = scalar_lea.vmem %s997, %s1013
              $region104: #{conditional_classifier_forward.1} parent=91 // loop_footer
                %s1001 = sadd.s32 %s999, 1
              $region105: #{conditional_classifier_forward.1} parent=91 // loop_footer_branch
                %998 = sbr.rel target = $region101
              $region106: #{conditional_classifier_forward.1} parent=91 // loop_exit
                _
            $region92: #{conditional_classifier_forward.1} parent=83 // pred_fallthru
              _
          $region84: #{conditional_classifier_forward.1} parent=79 // pred_fallthru
            _
          %1066 = vnop
        $region80: #{conditional_classifier_forward.1} parent=75 // pred_fallthru
          _
      $region76: #{conditional_classifier_forward.1} parent=5 // pred_fallthru
        _
      %p1067 = scmp.le.s32.totalorder 2, %s20
      // Predicated region
      $region129: #{conditional_classifier_forward.1} parent=5 // pred_check
        %p1068 = pneg %p1067
      $region130: #{conditional_classifier_forward.1} parent=5 // pred_check_branch
        %1070 = sbr.rel (%p1068) target = $region132
      $region131: #{conditional_classifier_forward.1} parent=5 // pred_region
        %s1071 = ssub.s32 %s20, 2
        // Predicated region
        $region133: #{conditional_classifier_forward.1} parent=131 // pred_check
          %p1072 = pneg %p363
        $region134: #{conditional_classifier_forward.1} parent=131 // pred_check_branch
          %1074 = sbr.rel (%p1072) target = $region136
        $region135: #{conditional_classifier_forward.1} parent=131 // pred_region
          %s1075 = sand.u32 %s348, 1
          %s1076 = sand.u32 %s348, 1
          %s1077 = smul.addr %s1076, 16
          %s1078 = scalar_lea.vmem [#allocation2], %s1077
        $region136: #{conditional_classifier_forward.1} parent=131 // pred_fallthru
          _
      $region132: #{conditional_classifier_forward.1} parent=5 // pred_fallthru
        _
    $region6: #{conditional_classifier_forward.1} parent=1 // loop_footer
      %s24 = sadd.s32 1, %s20
    $region7: #{conditional_classifier_forward.1} parent=1 // loop_footer_branch
      %19 = sbr.rel target = $region3
    $region8: #{conditional_classifier_forward.1} parent=1 // loop_exit
      _

</llo_original>
